<compile_context>
chip_gen: v5e
topology: v5e:2x2
jax: 0.10.0
libtpu: 0.0.40
codegen_flags: <defaults>
</compile_context>

<pallas_src>
import jax
import jax.numpy as jnp
import numpy as np
from jax.experimental import pallas as pl
from jax.experimental.pallas import tpu as pltpu


def _conv_lrelu_kernel(p_ref, w_ref, b_ref, o_ref):
    """One batch element per grid step.

    p_ref : (1, CKp, HW)  im2col patches (contraction dim zero-padded to CKp)
    w_ref : (COp, CKp)    spectrally-normalized conv weight, flattened+padded
    b_ref : (COp, 1)      conv bias (zero-padded)
    o_ref : (1, COp, HW)  output (lane-dense, HW = H*W)
    """
    acc = jnp.dot(w_ref[...], p_ref[0], preferred_element_type=jnp.float32)
    acc = acc + b_ref[...]                 # (COp, 1) broadcasts over lanes
    acc = jnp.maximum(acc, 0.2 * acc)      # LeakyReLU(0.2), single vmax
    o_ref[0] = acc.astype(o_ref.dtype)


def conv2d_layer(x, w_bar, bias, u, v, *, power_iterations=1, eps=1e-12):
    """Conv2dLayer forward: ZeroPad2d(1) -> spectral-norm Conv2d(C, C, 3) -> LeakyReLU(0.2).

    x: (N, C, H, W) float32.  Returns (N, C, H, W).
    """
    N, C, H, W = x.shape
    CO, CI, KH, KW = w_bar.shape

    # ---- SpectralNorm._update_u_v (tiny scalar/vector glue, plain JAX) ----
    w2 = w_bar.reshape(CO, -1)
    for _ in range(power_iterations):
        v = w2.T @ u
        v = v / (jnp.linalg.norm(v) + eps)
        u = w2 @ v
        u = u / (jnp.linalg.norm(u) + eps)
    sigma = u @ (w2 @ v)
    w = w_bar / sigma
    # TODO(synk): updated u/v buffers are not returned/persisted (PyTorch mutates them in-place).

    # ---- ZeroPad2d(1) + im2col (wrapper glue; fused by XLA into one copy) ----
    x_pad = jnp.pad(x, ((0, 0), (0, 0), (1, 1), (1, 1)))
    taps = [x_pad[:, :, kh:kh + H, kw:kw + W]
            for kh in range(KH) for kw in range(KW)]
    # (N, C, KH*KW, H, W) -> (N, C*KH*KW, H*W); C slowest, then (kh, kw) -> matches OIHW flatten.
    patches = jnp.stack(taps, axis=2).reshape(N, CI * KH * KW, H * W)

    # ---- sublane padding: out-channels -> >=8, contraction -> multiple of 8 ----
    CK = CI * KH * KW
    COp = max(8, -(-CO // 8) * 8)
    CKp = -(-CK // 8) * 8
    w_flat = jnp.pad(w.reshape(CO, CK), ((0, COp - CO), (0, CKp - CK)))
    b_col = jnp.pad(bias, (0, COp - CO)).reshape(COp, 1)
    patches = jnp.pad(patches, ((0, 0), (0, CKp - CK), (0, 0)))

    HW = H * W
    out = pl.pallas_call(
        _conv_lrelu_kernel,
        out_shape=jax.ShapeDtypeStruct((N, COp, HW), x.dtype),
        grid_spec=pltpu.PrefetchScalarGridSpec(
            num_scalar_prefetch=0,
            grid=(N,),
            in_specs=[
                pl.BlockSpec((1, CKp, HW), lambda n: (n, 0, 0)),
                pl.BlockSpec((COp, CKp), lambda n: (0, 0)),
                pl.BlockSpec((COp, 1), lambda n: (0, 0)),
            ],
            out_specs=pl.BlockSpec((1, COp, HW), lambda n: (n, 0, 0)),
        ),
        compiler_params=pltpu.CompilerParams(
            dimension_semantics=("parallel",)),
    )(patches, w_flat, b_col)

    # Slice off padded channels and restore NCHW.
    return out[:, :CO, :].reshape(N, CO, H, W)


def _reference(x, w_bar, bias, u, v, eps=1e-12):
    """Pure-JAX reference (PyTorch Conv2dLayer forward: pad -> sn-conv -> lrelu)."""
    C = w_bar.shape[0]
    w2 = w_bar.reshape(C, -1)
    vv = w2.T @ u
    vv = vv / (jnp.linalg.norm(vv) + eps)
    uu = w2 @ vv
    uu = uu / (jnp.linalg.norm(uu) + eps)
    sigma = uu @ (w2 @ vv)
    w = w_bar / sigma
    y = jax.lax.conv_general_dilated(
        x, w, window_strides=(1, 1), padding=((1, 1), (1, 1)),
        dimension_numbers=("NCHW", "OIHW", "NCHW"))
    y = y + bias.reshape(1, C, 1, 1)
    return jnp.where(y >= 0, y, 0.2 * y)


if __name__ == "__main__":
    key = jax.random.PRNGKey(0)
    k_x, k_w, k_b, k_u, k_v = jax.random.split(key, 5)

    N, C, H, W = 2, 4, 16, 16
    x = jax.random.normal(k_x, (N, C, H, W), dtype=jnp.float32)

    # Deterministic parameter init (shapes from nn.Conv2d(C, C, 3) + SpectralNorm)
    w_bar = jax.random.normal(k_w, (C, C, 3, 3), dtype=jnp.float32) * 0.1
    bias = jax.random.normal(k_b, (C,), dtype=jnp.float32) * 0.1
    u = jax.random.normal(k_u, (C,), dtype=jnp.float32)
    u = u / (jnp.linalg.norm(u) + 1e-12)
    v = jax.random.normal(k_v, (C * 3 * 3,), dtype=jnp.float32)
    v = v / (jnp.linalg.norm(v) + 1e-12)

    out = conv2d_layer(x, w_bar, bias, u, v)
    out = jax.block_until_ready(out)

    ref = jax.block_until_ready(_reference(x, w_bar, bias, u, v))
    np.testing.assert_allclose(np.asarray(out), np.asarray(ref),
                               rtol=1e-5, atol=1e-5)
    print("KERNEL_OK")
</pallas_src>

<mosaic_0001>
module attributes {stable_mosaic.version = 11 : i64} {
  func.func @_conv_lrelu_kernel(%arg0: i32, %arg1: memref<1x40x256xf32, #tpu.memory_space<vmem>>, %arg2: memref<8x40xf32, #tpu.memory_space<vmem>>, %arg3: memref<8x1xf32, #tpu.memory_space<vmem>>, %arg4: memref<1x8x256xf32, #tpu.memory_space<vmem>>) attributes {dimension_semantics = [#tpu.dimension_semantics<parallel>], iteration_bounds = array<i64: 2>, scalar_prefetch = 0 : i64, scratch_operands = 0 : i64, tpu.core_type = #tpu.core_type<tc>, window_params = [{transform_indices = @transform_0, window_bounds = array<i64: 1, 40, 256>}, {pipeline_mode = #tpu.pipeline_mode<synchronous>, transform_indices = @transform_1, window_bounds = array<i64: 8, 40>}, {pipeline_mode = #tpu.pipeline_mode<synchronous>, transform_indices = @transform_2, window_bounds = array<i64: 8, 1>}, {transform_indices = @transform_3, window_bounds = array<i64: 1, 8, 256>}]} {
    %c0 = arith.constant 0 : index
    %c0_0 = arith.constant 0 : index
    %0 = vector.load %arg2[%c0, %c0_0] : memref<8x40xf32, #tpu.memory_space<vmem>>, vector<8x40xf32>
    %c0_1 = arith.constant 0 : index
    %c0_2 = arith.constant 0 : index
    %c0_3 = arith.constant 0 : index
    %1 = vector.load %arg1[%c0_1, %c0_2, %c0_3] : memref<1x40x256xf32, #tpu.memory_space<vmem>>, vector<1x40x256xf32>
    %2 = vector.shape_cast %1 : vector<1x40x256xf32> to vector<40x256xf32>
    %cst = arith.constant dense<0.000000e+00> : vector<8x256xf32>
    %3 = tpu.matmul %0, %2, %cst {dimension_numbers = #tpu.dot_dimension_numbers<[1], [0], [0], [1], [0, 0, 1, 1], [], []>} : vector<8x40xf32>, vector<40x256xf32>, vector<8x256xf32> -> vector<8x256xf32>
    %c0_4 = arith.constant 0 : index
    %c0_5 = arith.constant 0 : index
    %4 = vector.load %arg3[%c0_4, %c0_5] : memref<8x1xf32, #tpu.memory_space<vmem>>, vector<8x1xf32>
    %5 = vector.broadcast %4 : vector<8x1xf32> to vector<8x256xf32>
    %6 = arith.addf %3, %5 : vector<8x256xf32>
    %cst_6 = arith.constant 2.000000e-01 : f32
    %7 = vector.broadcast %cst_6 : f32 to vector<8x256xf32>
    %8 = arith.mulf %7, %6 : vector<8x256xf32>
    %9 = arith.maximumf %6, %8 : vector<8x256xf32>
    %c0_7 = arith.constant 0 : index
    %c0_8 = arith.constant 0 : index
    %c0_9 = arith.constant 0 : index
    %10 = vector.load %arg4[%c0_7, %c0_8, %c0_9] : memref<1x8x256xf32, #tpu.memory_space<vmem>>, vector<1x8x256xf32>
    %11 = vector.shape_cast %10 : vector<1x8x256xf32> to vector<8x256xf32>
    %12 = vector.shape_cast %9 : vector<8x256xf32> to vector<1x8x256xf32>
    tpu.vector_store %arg4[%c0_7, %c0_8, %c0_9], %12 {strides = array<i32>} : memref<1x8x256xf32, #tpu.memory_space<vmem>>, vector<1x8x256xf32>,
    return
  }
  func.func @transform_0(%arg0: i32) -> (i32, i32, i32) {
    %c0_i32 = arith.constant 0 : i32
    %c0_i32_0 = arith.constant 0 : i32
    %c0_i32_1 = arith.constant 0 : i32
    return %arg0, %c0_i32, %c0_i32_0 : i32, i32, i32
  }
  func.func @transform_1(%arg0: i32) -> (i32, i32) {
    %c0_i32 = arith.constant 0 : i32
    %c0_i32_0 = arith.constant 0 : i32
    %c0_i32_1 = arith.constant 0 : i32
    return %c0_i32, %c0_i32_0 : i32, i32
  }
  func.func @transform_2(%arg0: i32) -> (i32, i32) {
    %c0_i32 = arith.constant 0 : i32
    %c0_i32_0 = arith.constant 0 : i32
    %c0_i32_1 = arith.constant 0 : i32
    return %c0_i32, %c0_i32_0 : i32, i32
  }
  func.func @transform_3(%arg0: i32) -> (i32, i32, i32) {
    %c0_i32 = arith.constant 0 : i32
    %c0_i32_0 = arith.constant 0 : i32
    %c0_i32_1 = arith.constant 0 : i32
    return %arg0, %c0_i32, %c0_i32_0 : i32, i32, i32
  }
}

</mosaic_0001>

<llo_original>
// kernel: tpu_custom_call.1
$region0: #{tpu_custom_call.1}
  #allocation0 [shape = 'u32[]', space=smem, size = 0x4, offset = 0x4, fixed_abs, tag = 'smem constant byte address 0x4 - core index']
  #allocation1 [shape = 'u32[72,128]{1,0:T(1,128)}', space=vmem, size = 0x9000, scoped, tag = 'internal scratch']
  %s0 = inlined_call_operand.hbm [shape: f32[2,40,256], index: 0, kind: input, shape index: {}]
  %s1 = inlined_call_operand.vmem [shape: f32[8,40], index: 1, kind: input, shape index: {}]
  %s2 = inlined_call_operand.vmem [shape: f32[8,1], index: 2, kind: input, shape index: {}]
  %s3 = inlined_call_operand.hbm [shape: f32[2,8,256], index: 3, kind: output, shape index: {}]
  %s4 = sld [smem:[#allocation0]]
  $region49: #{tpu_custom_call.1} parent=0
    _
  %s6 = ssub.s32 1, %s4
  %s7 = scalar_select 0, %s6, %s4
  $region1: #{tpu_custom_call.1} parent=0
    #allocation2 [shape = 'u8[81920]{0}', space=vmem, size = 0x14000, scoped, tag = 'input window, operand 0']
    #allocation3 [shape = 's32[2]{0}', space=sflag, size = 0x8, scoped, tag = 'scoped memory for tpu_custom_call.1']
    #allocation4 [shape = 's32[2]{0}', space=sflag, size = 0x8, scoped, tag = 'scoped memory for tpu_custom_call.1']
    #allocation5 [shape = 'u8[16384]{0}', space=vmem, size = 0x4000, scoped, tag = 'output window, operand 0']
    %8 = vsyncpa [#allocation3], 0
    %s9 = scalar_lea.sflag [#allocation3], 1
    %10 = vsyncpa %s9, 0
    %11 = vsyncpa [#allocation4], 0
    %s12 = scalar_lea.sflag [#allocation4], 1
    %13 = vsyncpa %s12, 0
    loop: start=0, step=1, limit=4
    $region2: #{tpu_custom_call.1} parent=1 // loop_pre_header
      _
    $region3: #{tpu_custom_call.1} parent=1 // loop_header
      %s15 = sphi 0, %s19
      %p16 = scmp.ge.s32.totalorder %s15, 4
      %s25 = sphi 0, %s27
      %s28 = sphi 0, %s25
      %s29 = sphi 0, %s28
      %s45 = sphi 0, %s29
      %s49 = sphi 0, %s49
      %s51 = sphi 0, %s49
      %s52 = sphi 0, %s51
      %s66 = sphi 0, %s52
      %s70 = sphi 0, %s70
      %s72 = sphi 0, %s70
      %s73 = sphi 0, %s72
      %s87 = sphi 0, %s73
      %s93 = sphi 0, %s95
      %s96 = sphi 0, %s93
      %s97 = sphi 0, %s96
      %s113 = sphi 0, %s97
    $region4: #{tpu_custom_call.1} parent=1 // loop_header_branch
      %18 = sbr.rel (%p16) target = $region8
    $region5: #{tpu_custom_call.1} parent=1 // loop_body
      %s20 = ssub.s32 %s15, 1
      %s21 = ssub.s32 %s15, 2
      %s22 = sadd.s32 %s15, 1
      %s23 = ssub.s32 %s15, %s22
      %p24 = scmp.eq.s32.totalorder %s23, 0
      %s26 = sadd.s32 %s25, 1
      %s27 = scalar_select %p24, %s25, %s26
      %p30 = pneg %p24
      %p31 = scmp.eq.s32.totalorder %s15, 1
      %p32 = por %p30, %p31
      %p33 = scmp.ne.s32.totalorder %s25, %s28
      %p34 = scmp.eq.s32.totalorder %s15, 0
      %p35 = por %p33, %p34
      %p36 = scmp.ne.s32.totalorder %s25, %s28
      %p37 = scmp.eq.s32.totalorder %s20, 1
      %p38 = por %p36, %p37
      %p39 = scmp.ne.s32.totalorder %s28, %s29
      %p40 = scmp.eq.s32.totalorder %s20, 0
      %p41 = por %p39, %p40
      %p42 = scmp.ne.s32.totalorder %s28, %s29
      %p43 = scmp.eq.s32.totalorder %s21, 1
      %p44 = por %p42, %p43
      %p46 = scmp.ne.s32.totalorder %s29, %s45
      %p47 = scmp.eq.s32.totalorder %s21, 0
      %p48 = por %p46, %p47
      %s50 = sadd.s32 %s49, 1
      %p53 = scmp.eq.s32.totalorder %s15, 1
      %p54 = scmp.ne.s32.totalorder %s49, %s51
      %p55 = scmp.eq.s32.totalorder %s15, 0
      %p56 = por %p54, %p55
      %p57 = scmp.ne.s32.totalorder %s49, %s51
      %p58 = scmp.eq.s32.totalorder %s20, 1
      %p59 = por %p57, %p58
      %p60 = scmp.ne.s32.totalorder %s51, %s52
      %p61 = scmp.eq.s32.totalorder %s20, 0
      %p62 = por %p60, %p61
      %p63 = scmp.ne.s32.totalorder %s51, %s52
      %p64 = scmp.eq.s32.totalorder %s21, 1
      %p65 = por %p63, %p64
      %p67 = scmp.ne.s32.totalorder %s52, %s66
      %p68 = scmp.eq.s32.totalorder %s21, 0
      %p69 = por %p67, %p68
      %s71 = sadd.s32 %s70, 1
      %p74 = scmp.eq.s32.totalorder %s15, 1
      %p75 = scmp.ne.s32.totalorder %s70, %s72
      %p76 = scmp.eq.s32.totalorder %s15, 0
      %p77 = por %p75, %p76
      %p78 = scmp.ne.s32.totalorder %s70, %s72
      %p79 = scmp.eq.s32.totalorder %s20, 1
      %p80 = por %p78, %p79
      %p81 = scmp.ne.s32.totalorder %s72, %s73
      %p82 = scmp.eq.s32.totalorder %s20, 0
      %p83 = por %p81, %p82
      %p84 = scmp.ne.s32.totalorder %s72, %s73
      %p85 = scmp.eq.s32.totalorder %s21, 1
      %p86 = por %p84, %p85
      %p88 = scmp.ne.s32.totalorder %s73, %s87
      %p89 = scmp.eq.s32.totalorder %s21, 0
      %p90 = por %p88, %p89
      %s91 = ssub.s32 %s15, %s22
      %p92 = scmp.eq.s32.totalorder %s91, 0
      %s94 = sadd.s32 %s93, 1
      %s95 = scalar_select %p92, %s93, %s94
      %p98 = pneg %p92
      %p99 = scmp.eq.s32.totalorder %s15, 1
      %p100 = por %p98, %p99
      %p101 = scmp.ne.s32.totalorder %s93, %s96
      %p102 = scmp.eq.s32.totalorder %s15, 0
      %p103 = por %p101, %p102
      %p104 = scmp.ne.s32.totalorder %s93, %s96
      %p105 = scmp.eq.s32.totalorder %s20, 1
      %p106 = por %p104, %p105
      %p107 = scmp.ne.s32.totalorder %s96, %s97
      %p108 = scmp.eq.s32.totalorder %s20, 0
      %p109 = por %p107, %p108
      %p110 = scmp.ne.s32.totalorder %s96, %s97
      %p111 = scmp.eq.s32.totalorder %s21, 1
      %p112 = por %p110, %p111
      %p114 = scmp.ne.s32.totalorder %s97, %s113
      %p115 = scmp.eq.s32.totalorder %s21, 0
      %p116 = por %p114, %p115
      %p117 = scmp.le.s32.totalorder 1, %s15
      %p118 = scmp.lt.s32.totalorder %s15, 3
      %p119 = pnand %p117, %p118
      %p120 = pneg %p119
      // Predicated region
      $region9: #{tpu_custom_call.1} parent=5 // pred_check
        _
      $region10: #{tpu_custom_call.1} parent=5 // pred_check_branch
        %122 = sbr.rel (%p119) target = $region12
      $region11: #{tpu_custom_call.1} parent=5 // pred_region
        %s123 = ssub.s32 %s15, 1
        // Predicated region
        $region13: #{tpu_custom_call.1} parent=11 // pred_check
          %p124 = pneg %p62
        $region14: #{tpu_custom_call.1} parent=11 // pred_check_branch
          %126 = sbr.rel (%p124) target = $region16
        $region15: #{tpu_custom_call.1} parent=11 // pred_region
          _
        $region16: #{tpu_custom_call.1} parent=11 // pred_fallthru
          _
        // Predicated region
        $region17: #{tpu_custom_call.1} parent=11 // pred_check
          %p127 = pneg %p83
        $region18: #{tpu_custom_call.1} parent=11 // pred_check_branch
          %129 = sbr.rel (%p127) target = $region20
        $region19: #{tpu_custom_call.1} parent=11 // pred_region
          _
        $region20: #{tpu_custom_call.1} parent=11 // pred_fallthru
          _
      $region12: #{tpu_custom_call.1} parent=5 // pred_fallthru
        _
      %p130 = scmp.lt.s32.totalorder %s15, 2
      // Predicated region
      $region21: #{tpu_custom_call.1} parent=5 // pred_check
        %p131 = pneg %p130
      $region22: #{tpu_custom_call.1} parent=5 // pred_check_branch
        %133 = sbr.rel (%p131) target = $region24
      $region23: #{tpu_custom_call.1} parent=5 // pred_region
        // Predicated region
        $region25: #{tpu_custom_call.1} parent=23 // pred_check
          %p134 = pneg %p35
        $region26: #{tpu_custom_call.1} parent=23 // pred_check_branch
          %136 = sbr.rel (%p134) target = $region28
        $region27: #{tpu_custom_call.1} parent=23 // pred_region
          %s137 = sand.u32 %s25, 1
          %s138 = scalar_lea.sflag [#allocation3], %s137
          %s139 = sand.u32 %s25, 1
          %s140 = smul.addr %s139, 80
          %s141 = scalar_lea.vmem [#allocation2], %s140
          %143 = vsyncadd %s138, 0
          %s144 = smul.addr %s15, 10
          %s145 = smul.addr %s144, 8
          %s146 = scalar_lea.hbm %s0, %s145
          %s147 = sshll.u32 %s146, 4
          %s148 = int_to_ptr.hbm [resolvable:$true] %s147
          %s149 = sshll.u32 %s141, 4
          %s150 = int_to_ptr.vmem [resolvable:$true] %s149
          %155 = dma.hbm_to_vmem [thread:$0]  %s148, 1280, %s150, %s138, 256, 256, 16
        $region28: #{tpu_custom_call.1} parent=23 // pred_fallthru
          _
      $region24: #{tpu_custom_call.1} parent=5 // pred_fallthru
        _
      %p156 = scmp.le.s32.totalorder 1, %s15
      %p157 = scmp.lt.s32.totalorder %s15, 3
      %p158 = pnand %p156, %p157
      %p159 = pneg %p158
      // Predicated region
      $region29: #{tpu_custom_call.1} parent=5 // pred_check
        _
      $region30: #{tpu_custom_call.1} parent=5 // pred_check_branch
        %161 = sbr.rel (%p158) target = $region32
      $region31: #{tpu_custom_call.1} parent=5 // pred_region
        %s162 = ssub.s32 %s15, 1
        %s163 = sand.u32 %s28, 1
        %s164 = scalar_lea.sflag [#allocation3], %s163
        %s165 = sand.u32 %s28, 1
        %s166 = smul.addr %s165, 80
        %s167 = scalar_lea.vmem [#allocation2], %s166
        // Predicated region
        $region33: #{tpu_custom_call.1} parent=31 // pred_check
          %p168 = pneg %p41
        $region34: #{tpu_custom_call.1} parent=31 // pred_check_branch
          %170 = sbr.rel (%p168) target = $region36
        $region35: #{tpu_custom_call.1} parent=31 // pred_region
          %172 = dma.done %s164, 1280
        $region36: #{tpu_custom_call.1} parent=31 // pred_fallthru
          _
        %s173 = sand.u32 %s28, 1
        %s174 = scalar_lea.sflag [#allocation3], %s173
        %s175 = sand.u32 %s28, 1
        %s176 = smul.addr %s175, 80
        %s177 = scalar_lea.vmem [#allocation2], %s176
        %p178 = pneg %p41
        %p179 = pneg %p38
        %p180 = pneg %p62
        %p181 = pneg %p59
        %p182 = pneg %p83
        %p183 = pneg %p80
        %p184 = pneg %p109
        %p185 = pneg %p106
        %s186 = sand.u32 %s96, 1
        %s187 = scalar_lea.sflag [#allocation4], %s186
        %s188 = sand.u32 %s96, 1
        %s189 = smul.addr %s188, 16
        %s190 = scalar_lea.vmem [#allocation5], %s189
        %v191 = vld [vmem:[%s1] sm:$0xff]
        %v192 = vld [vmem:[%s167] sm:$0xff]
        %v193 = vld [vmem:[%s167 + $0x8] sm:$0xff]
        %v194 = vld [vmem:[%s167 + $0x10] sm:$0xff]
        %v195 = vld [vmem:[%s167 + $0x18] sm:$0xff]
        %v196 = vld [vmem:[%s167 + $0x20] sm:$0xff]
        %v197 = vld [vmem:[%s167 + $0x28] sm:$0xff]
        %v198 = vld [vmem:[%s167 + $0x30] sm:$0xff]
        %v199 = vld [vmem:[%s167 + $0x38] sm:$0xff]
        %v200 = vld [vmem:[%s167 + $0x40] sm:$0xff]
        %v201 = vld [vmem:[%s167 + $0x48] sm:$0xff]
        %v202 = vld [vmem:[%s2] sm:$0xff]
        %204 = vset.pattern.permute.xlu0 0
        %205 = vperm.xlu0 %204, %v202
        %v206 = vpop.permute.xlu0 %205
        %vm208 = vcmask 326656
        %v210 = vsel %vm208, %v191, 0
        %212 = vmatpush.msra.mxu0 0.0
        %213 = vmatpush.msra.mxu0 0.0
        %214 = vmatpush.msra.mxu0 0.0
        %215 = vmatpush.msra.mxu0 0.0
        %216 = vmatpush.msra.mxu0 0.0
        %217 = vmatpush.msra.mxu0 0.0
        %218 = vmatpush.msra.mxu0 0.0
        %219 = vmatpush.msra.mxu0 0.0
        %220 = vmatpush.msra.mxu0 0.0
        %221 = vmatpush.msra.mxu0 0.0
        %222 = vmatpush.msra.mxu0 0.0
        %223 = vmatpush.msra.mxu0 %v200
        %224 = vmatpush.msra.mxu0 %v198
        %225 = vmatpush.msra.mxu0 %v196
        %226 = vmatpush.msra.mxu0 %v194
        %227 = vmatpush.msra.mxu0 %v192
        %228 = vmatmul.f32.gmra.mxu0 %v210
        %v229 = vpop.f32.mrf.mxu0
        %v230 = vadd.f32 %v206, %v229
        %231 = vdwg.mxu0
        %232 = vmatpush.msra.mxu0 0.0
        %233 = vmatpush.msra.mxu0 0.0
        %234 = vmatpush.msra.mxu0 0.0
        %235 = vmatpush.msra.mxu0 0.0
        %236 = vmatpush.msra.mxu0 0.0
        %237 = vmatpush.msra.mxu0 0.0
        %238 = vmatpush.msra.mxu0 0.0
        %239 = vmatpush.msra.mxu0 0.0
        %240 = vmatpush.msra.mxu0 0.0
        %241 = vmatpush.msra.mxu0 0.0
        %242 = vmatpush.msra.mxu0 0.0
        %243 = vmatpush.msra.mxu0 %v201
        %244 = vmatpush.msra.mxu0 %v199
        %245 = vmatpush.msra.mxu0 %v197
        %246 = vmatpush.msra.mxu0 %v195
        %247 = vmatpush.msra.mxu0 %v193
        %248 = vmatmul.f32.gmra.mxu0 %v210
        %v249 = vpop.f32.mrf.mxu0
        %v250 = vadd.f32 %v206, %v249
        %251 = vdwg.mxu0
        %v252 = vmul.f32 %v230, 0.2
        %v253 = vmul.f32 %v250, 0.2
        %v254 = vmax.f32 %v230, %v252
        %v255 = vmax.f32 %v250, %v253
        %256 = vst [vmem:[%s190] sm:$0xff] %v254
        %257 = vst [vmem:[%s190 + $0x8] sm:$0xff] %v255
        %s258 = sand.u32 %s96, 1
        %s259 = scalar_lea.sflag [#allocation4], %s258
        %s260 = sand.u32 %s96, 1
        %s261 = smul.addr %s260, 16
        %s262 = scalar_lea.vmem [#allocation5], %s261
        // Predicated region
        $region37: #{tpu_custom_call.1} parent=31 // pred_check
          %p263 = pneg %p106
        $region38: #{tpu_custom_call.1} parent=31 // pred_check_branch
          %265 = sbr.rel (%p263) target = $region40
        $region39: #{tpu_custom_call.1} parent=31 // pred_region
          %267 = vsyncadd %s259, 0
          %s268 = smul.addr %s20, 2
          %s269 = smul.addr %s268, 8
          %s270 = scalar_lea.hbm %s3, %s269
          %s272 = sshll.u32 %s262, 4
          %s273 = int_to_ptr.vmem [resolvable:$true] %s272
          %s274 = sshll.u32 %s270, 4
          %s275 = int_to_ptr.hbm [resolvable:$true] %s274
          %277 = dma.vmem_to_hbm [thread:$0]  %s273, 256, %s275, %s259
        $region40: #{tpu_custom_call.1} parent=31 // pred_fallthru
          _
      $region32: #{tpu_custom_call.1} parent=5 // pred_fallthru
        _
      %p278 = scmp.le.s32.totalorder 2, %s15
      // Predicated region
      $region41: #{tpu_custom_call.1} parent=5 // pred_check
        %p279 = pneg %p278
      $region42: #{tpu_custom_call.1} parent=5 // pred_check_branch
        %281 = sbr.rel (%p279) target = $region44
      $region43: #{tpu_custom_call.1} parent=5 // pred_region
        %s282 = ssub.s32 %s15, 2
        // Predicated region
        $region45: #{tpu_custom_call.1} parent=43 // pred_check
          %p283 = pneg %p112
        $region46: #{tpu_custom_call.1} parent=43 // pred_check_branch
          %285 = sbr.rel (%p283) target = $region48
        $region47: #{tpu_custom_call.1} parent=43 // pred_region
          %s286 = sand.u32 %s97, 1
          %s287 = scalar_lea.sflag [#allocation4], %s286
          %s288 = sand.u32 %s97, 1
          %s289 = smul.addr %s288, 16
          %s290 = scalar_lea.vmem [#allocation5], %s289
          %292 = dma.done %s287, 256
        $region48: #{tpu_custom_call.1} parent=43 // pred_fallthru
          _
      $region44: #{tpu_custom_call.1} parent=5 // pred_fallthru
        _
    $region6: #{tpu_custom_call.1} parent=1 // loop_footer
      %s19 = sadd.s32 1, %s15
    $region7: #{tpu_custom_call.1} parent=1 // loop_footer_branch
      %14 = sbr.rel target = $region3
    $region8: #{tpu_custom_call.1} parent=1 // loop_exit
      _
    %293 = vsyncpa [#allocation3], 1
    %s294 = scalar_lea.sflag [#allocation3], 1
    %295 = vsyncpa %s294, 1
    %296 = vsyncpa [#allocation4], 1
    %s297 = scalar_lea.sflag [#allocation4], 1
    %298 = vsyncpa %s297, 1

</llo_original>
